<compile_context>
chip_gen: v7x
topology: tpu7x:2x2x1
jax: 0.10.0
libtpu: 0.0.40
codegen_flags: <defaults>
</compile_context>

<pallas_src>
import jax
import jax.numpy as jnp
from jax.experimental import pallas as pl
from jax.experimental.pallas import tpu as pltpu


def _sn_res_block_kernel(x_ref, w_ref, b_ref, o_ref, xpad_ref, xcol_ref):
    # x_ref   : (1, C, L)        input block for one batch element (NCL)
    # w_ref   : (C_out, K*C_in)  spectrally-normalized weight, im2col column order
    # b_ref   : (C_out, 1)       bias
    # o_ref   : (1, C, L)        output block
    # xpad_ref: (C, L + K - 1)   VMEM scratch: zero-padded ReLU(x)
    # xcol_ref: (K*C, L)         VMEM scratch: im2col block
    C = x_ref.shape[1]
    L = x_ref.shape[2]
    K = w_ref.shape[1] // C
    pad_l = (K - 1) // 2

    x = x_ref[0]                                   # (C, L): one load used for both ReLU path and residual

    # Zero-padded ReLU'd input, built entirely in VMEM (no padded copy in HBM).
    xpad_ref[...] = jnp.zeros_like(xpad_ref)
    xpad_ref[:, pl.ds(pad_l, L)] = jnp.maximum(x, 0.0)

    # im2col: row block k holds ReLU(x)[ci, l + k - pad_l] (zeros outside range).
    for k in range(K):                             # static unroll over filter taps
        xcol_ref[pl.ds(k * C, C), :] = xpad_ref[:, pl.ds(k, L)]

    # Single fused MXU matmul over the K*C_in contraction dimension.
    y = jnp.dot(w_ref[...], xcol_ref[...], preferred_element_type=jnp.float32)
    y = y + b_ref[...]                             # bias broadcast over L (lanes)
    o_ref[0] = (x + 0.3 * y).astype(o_ref.dtype)


def sn_residual_block(x_ncl, w_conv, bias, filter_width):
    """Forward of SNResidualBlock.  x_ncl: (N, C, L); w_conv: (C_out, C_in, K)."""
    N, C, L = x_ncl.shape
    K = filter_width
    # (C_out, C_in, K) -> (C_out, K*C_in) with column index k*C_in + ci,
    # matching the im2col row order built inside the kernel.
    w2 = jnp.transpose(w_conv, (0, 2, 1)).reshape(C, K * C).astype(jnp.float32)
    b2 = bias.reshape(C, 1).astype(jnp.float32)

    # TODO(synk): for very long sequences, tile L (grid=(N, L//TL)) with manual
    # halo DMA so per-step VMEM stays bounded on v7x and both TensorCores get
    # work when N is small; demo shapes fit one full (C, L) row per grid step.
    return pl.pallas_call(
        _sn_res_block_kernel,
        out_shape=jax.ShapeDtypeStruct((N, C, L), x_ncl.dtype),
        grid_spec=pltpu.PrefetchScalarGridSpec(
            num_scalar_prefetch=0,
            grid=(N,),
            in_specs=[
                pl.BlockSpec((1, C, L), lambda n: (n, 0, 0)),
                pl.BlockSpec((C, K * C), lambda n: (0, 0)),   # resident weight
                pl.BlockSpec((C, 1), lambda n: (0, 0)),       # resident bias
            ],
            out_specs=pl.BlockSpec((1, C, L), lambda n: (n, 0, 0)),
            scratch_shapes=[
                pltpu.VMEM((C, L + K - 1), jnp.float32),
                pltpu.VMEM((K * C, L), jnp.float32),
            ],
        ),
        compiler_params=pltpu.CompilerParams(
            dimension_semantics=("parallel",),
        ),
    )(x_ncl, w2, b2)


def spectral_normalize(w, key, n_power_iterations=3, eps=1e-12):
    """Mimics nn.utils.parametrizations.spectral_norm on a Conv1d weight.

    w: (C_out, C_in, K). Reshaped to (C_out, C_in*K), sigma estimated with
    power iteration (u initialized deterministically from `key`), returns W / sigma.
    Note: PyTorch keeps u/v as persistent module buffers updated every forward;
    here the estimate is recomputed from `key` (fine for a stateless forward).
    """
    c_out = w.shape[0]
    w_mat = w.reshape(c_out, -1)
    u = jax.random.normal(key, (c_out,), dtype=w.dtype)
    u = u / (jnp.linalg.norm(u) + eps)
    v = w_mat.T @ u
    v = v / (jnp.linalg.norm(v) + eps)
    for _ in range(n_power_iterations):
        v = w_mat.T @ u
        v = v / (jnp.linalg.norm(v) + eps)
        u = w_mat @ v
        u = u / (jnp.linalg.norm(u) + eps)
    sigma = u @ (w_mat @ v)
    return w / sigma


if __name__ == "__main__":
    key = jax.random.PRNGKey(0)
    k_x, k_w, k_b, k_u = jax.random.split(key, 4)

    N, C, L, K = 2, 4, 16, 5  # batch, in_channels(=out_channels), length, filter_width

    x = jax.random.normal(k_x, (N, C, L), dtype=jnp.float32)
    w_raw = 0.1 * jax.random.normal(k_w, (C, C, K), dtype=jnp.float32)
    bias = 0.05 * jax.random.normal(k_b, (C,), dtype=jnp.float32)

    # Spectral normalization of the conv weight (deterministic power iteration).
    w_sn = spectral_normalize(w_raw, k_u)

    out = sn_residual_block(x, w_sn, bias, K)
    out = jax.block_until_ready(out)

    # Reference check against lax conv (plain JAX).
    pad_l = (K - 1) // 2
    pad_r = K - 1 - pad_l
    xr = jnp.maximum(x, 0.0)
    conv = jax.lax.conv_general_dilated(
        xr, w_sn, window_strides=(1,), padding=[(pad_l, pad_r)],
        dimension_numbers=("NCH", "OIH", "NCH"),
    )
    ref = x + 0.3 * (conv + bias[None, :, None])

    assert out.shape == (N, C, L)
    assert jnp.allclose(out, ref, atol=1e-5, rtol=1e-5), (
        float(jnp.max(jnp.abs(out - ref)))
    )
    print("KERNEL_OK")
</pallas_src>

<mosaic_0001>
module attributes {stable_mosaic.version = 11 : i64} {
  func.func @_sn_res_block_kernel(%arg0: i32, %arg1: memref<1x4x16xf32, #tpu.memory_space<vmem>>, %arg2: memref<4x20xf32, #tpu.memory_space<vmem>>, %arg3: memref<4x1xf32, #tpu.memory_space<vmem>>, %arg4: memref<1x4x16xf32, #tpu.memory_space<vmem>>, %arg5: memref<4x20xf32, #tpu.memory_space<vmem>>, %arg6: memref<20x16xf32, #tpu.memory_space<vmem>>) attributes {dimension_semantics = [#tpu.dimension_semantics<parallel>], iteration_bounds = array<i64: 2>, scalar_prefetch = 0 : i64, scratch_operands = 2 : i64, tpu.core_type = #tpu.core_type<tc>, window_params = [{transform_indices = @transform_0, window_bounds = array<i64: 1, 4, 16>}, {pipeline_mode = #tpu.pipeline_mode<synchronous>, transform_indices = @transform_1, window_bounds = array<i64: 4, 20>}, {pipeline_mode = #tpu.pipeline_mode<synchronous>, transform_indices = @transform_2, window_bounds = array<i64: 4, 1>}, {transform_indices = @transform_3, window_bounds = array<i64: 1, 4, 16>}]} {
    %c0 = arith.constant 0 : index
    %c0_0 = arith.constant 0 : index
    %c0_1 = arith.constant 0 : index
    %0 = vector.load %arg1[%c0, %c0_0, %c0_1] : memref<1x4x16xf32, #tpu.memory_space<vmem>>, vector<1x4x16xf32>
    %1 = vector.shape_cast %0 : vector<1x4x16xf32> to vector<4x16xf32>
    %cst = arith.constant 0.000000e+00 : f32
    %2 = vector.broadcast %cst : f32 to vector<4x20xf32>
    %c0_2 = arith.constant 0 : index
    %c0_3 = arith.constant 0 : index
    %3 = vector.load %arg5[%c0_2, %c0_3] : memref<4x20xf32, #tpu.memory_space<vmem>>, vector<4x20xf32>
    tpu.vector_store %arg5[%c0_2, %c0_3], %2 {strides = array<i32>} : memref<4x20xf32, #tpu.memory_space<vmem>>, vector<4x20xf32>,
    %cst_4 = arith.constant 0.000000e+00 : f32
    %4 = vector.broadcast %cst_4 : f32 to vector<4x16xf32>
    %5 = arith.maximumf %1, %4 : vector<4x16xf32>
    %c0_5 = arith.constant 0 : index
    %c2 = arith.constant 2 : index
    %6 = vector.load %arg5[%c0_5, %c2] : memref<4x20xf32, #tpu.memory_space<vmem>>, vector<4x16xf32>
    tpu.vector_store %arg5[%c0_5, %c2], %5 {strides = array<i32>} : memref<4x20xf32, #tpu.memory_space<vmem>>, vector<4x16xf32>,
    %c0_6 = arith.constant 0 : index
    %c0_7 = arith.constant 0 : index
    %7 = vector.load %arg5[%c0_6, %c0_7] : memref<4x20xf32, #tpu.memory_space<vmem>>, vector<4x16xf32>
    %c0_8 = arith.constant 0 : index
    %c0_9 = arith.constant 0 : index
    %8 = vector.load %arg6[%c0_8, %c0_9] : memref<20x16xf32, #tpu.memory_space<vmem>>, vector<4x16xf32>
    tpu.vector_store %arg6[%c0_8, %c0_9], %7 {strides = array<i32>} : memref<20x16xf32, #tpu.memory_space<vmem>>, vector<4x16xf32>,
    %c0_10 = arith.constant 0 : index
    %c1 = arith.constant 1 : index
    %9 = vector.load %arg5[%c0_10, %c1] : memref<4x20xf32, #tpu.memory_space<vmem>>, vector<4x16xf32>
    %c4 = arith.constant 4 : index
    %c0_11 = arith.constant 0 : index
    %10 = vector.load %arg6[%c4, %c0_11] : memref<20x16xf32, #tpu.memory_space<vmem>>, vector<4x16xf32>
    tpu.vector_store %arg6[%c4, %c0_11], %9 {strides = array<i32>} : memref<20x16xf32, #tpu.memory_space<vmem>>, vector<4x16xf32>,
    %c0_12 = arith.constant 0 : index
    %c2_13 = arith.constant 2 : index
    %11 = vector.load %arg5[%c0_12, %c2_13] : memref<4x20xf32, #tpu.memory_space<vmem>>, vector<4x16xf32>
    %c8 = arith.constant 8 : index
    %c0_14 = arith.constant 0 : index
    %12 = vector.load %arg6[%c8, %c0_14] : memref<20x16xf32, #tpu.memory_space<vmem>>, vector<4x16xf32>
    tpu.vector_store %arg6[%c8, %c0_14], %11 {strides = array<i32>} : memref<20x16xf32, #tpu.memory_space<vmem>>, vector<4x16xf32>,
    %c0_15 = arith.constant 0 : index
    %c3 = arith.constant 3 : index
    %13 = vector.load %arg5[%c0_15, %c3] : memref<4x20xf32, #tpu.memory_space<vmem>>, vector<4x16xf32>
    %c12 = arith.constant 12 : index
    %c0_16 = arith.constant 0 : index
    %14 = vector.load %arg6[%c12, %c0_16] : memref<20x16xf32, #tpu.memory_space<vmem>>, vector<4x16xf32>
    tpu.vector_store %arg6[%c12, %c0_16], %13 {strides = array<i32>} : memref<20x16xf32, #tpu.memory_space<vmem>>, vector<4x16xf32>,
    %c0_17 = arith.constant 0 : index
    %c4_18 = arith.constant 4 : index
    %15 = vector.load %arg5[%c0_17, %c4_18] : memref<4x20xf32, #tpu.memory_space<vmem>>, vector<4x16xf32>
    %c16 = arith.constant 16 : index
    %c0_19 = arith.constant 0 : index
    %16 = vector.load %arg6[%c16, %c0_19] : memref<20x16xf32, #tpu.memory_space<vmem>>, vector<4x16xf32>
    tpu.vector_store %arg6[%c16, %c0_19], %15 {strides = array<i32>} : memref<20x16xf32, #tpu.memory_space<vmem>>, vector<4x16xf32>,
    %c0_20 = arith.constant 0 : index
    %c0_21 = arith.constant 0 : index
    %17 = vector.load %arg2[%c0_20, %c0_21] : memref<4x20xf32, #tpu.memory_space<vmem>>, vector<4x20xf32>
    %c0_22 = arith.constant 0 : index
    %c0_23 = arith.constant 0 : index
    %18 = vector.load %arg6[%c0_22, %c0_23] : memref<20x16xf32, #tpu.memory_space<vmem>>, vector<20x16xf32>
    %cst_24 = arith.constant dense<0.000000e+00> : vector<4x16xf32>
    %19 = tpu.matmul %17, %18, %cst_24 {dimension_numbers = #tpu.dot_dimension_numbers<[1], [0], [0], [1], [0, 0, 1, 1], [], []>} : vector<4x20xf32>, vector<20x16xf32>, vector<4x16xf32> -> vector<4x16xf32>
    %c0_25 = arith.constant 0 : index
    %c0_26 = arith.constant 0 : index
    %20 = vector.load %arg3[%c0_25, %c0_26] : memref<4x1xf32, #tpu.memory_space<vmem>>, vector<4x1xf32>
    %21 = vector.broadcast %20 : vector<4x1xf32> to vector<4x16xf32>
    %22 = arith.addf %19, %21 : vector<4x16xf32>
    %cst_27 = arith.constant 3.000000e-01 : f32
    %23 = vector.broadcast %cst_27 : f32 to vector<4x16xf32>
    %24 = arith.mulf %23, %22 : vector<4x16xf32>
    %25 = arith.addf %1, %24 : vector<4x16xf32>
    %c0_28 = arith.constant 0 : index
    %c0_29 = arith.constant 0 : index
    %c0_30 = arith.constant 0 : index
    %26 = vector.load %arg4[%c0_28, %c0_29, %c0_30] : memref<1x4x16xf32, #tpu.memory_space<vmem>>, vector<1x4x16xf32>
    %27 = vector.shape_cast %26 : vector<1x4x16xf32> to vector<4x16xf32>
    %28 = vector.shape_cast %25 : vector<4x16xf32> to vector<1x4x16xf32>
    tpu.vector_store %arg4[%c0_28, %c0_29, %c0_30], %28 {strides = array<i32>} : memref<1x4x16xf32, #tpu.memory_space<vmem>>, vector<1x4x16xf32>,
    return
  }
  func.func @transform_0(%arg0: i32) -> (i32, i32, i32) {
    %c0_i32 = arith.constant 0 : i32
    %c0_i32_0 = arith.constant 0 : i32
    %c0_i32_1 = arith.constant 0 : i32
    return %arg0, %c0_i32, %c0_i32_0 : i32, i32, i32
  }
  func.func @transform_1(%arg0: i32) -> (i32, i32) {
    %c0_i32 = arith.constant 0 : i32
    %c0_i32_0 = arith.constant 0 : i32
    %c0_i32_1 = arith.constant 0 : i32
    return %c0_i32, %c0_i32_0 : i32, i32
  }
  func.func @transform_2(%arg0: i32) -> (i32, i32) {
    %c0_i32 = arith.constant 0 : i32
    %c0_i32_0 = arith.constant 0 : i32
    %c0_i32_1 = arith.constant 0 : i32
    return %c0_i32, %c0_i32_0 : i32, i32
  }
  func.func @transform_3(%arg0: i32) -> (i32, i32, i32) {
    %c0_i32 = arith.constant 0 : i32
    %c0_i32_0 = arith.constant 0 : i32
    %c0_i32_1 = arith.constant 0 : i32
    return %arg0, %c0_i32, %c0_i32_0 : i32, i32, i32
  }
}

</mosaic_0001>

<llo_original>
// kernel: tpu_custom_call.1
$region0: #{tpu_custom_call.1}
  #allocation0 [shape = 'u32[]', space=smem, size = 0x4, offset = 0x4, fixed_abs, tag = 'smem constant byte address 0x4 - core index']
  #allocation1 [shape = 'u32[144,128]{1,0:T(1,128)}', space=vmem, size = 0x12000, scoped, tag = 'internal scratch']
  #allocation2 [shape = 'f32[4,20]{1,0:T(4,128)}', space=vmem, size = 0x800, scoped, tag = 'scratch operand']
  #allocation3 [shape = 'f32[20,16]{1,0:T(8,128)}', space=vmem, size = 0x3000, scoped, tag = 'scratch operand']
  %s0 = inlined_call_operand.hbm [shape: f32[2,4,16], index: 0, kind: input, shape index: {}]
  %s1 = inlined_call_operand.vmem [shape: f32[4,20], index: 1, kind: input, shape index: {}]
  %s2 = inlined_call_operand.vmem [shape: f32[4,1], index: 2, kind: input, shape index: {}]
  %s3 = inlined_call_operand.hbm [shape: f32[2,4,16], index: 3, kind: output, shape index: {}]
  %s4 = sld [smem:[#allocation0]]
  $region49: #{tpu_custom_call.1} parent=0
    _
  %s6 = ssub.s32 1, %s4
  %s7 = scalar_select 0, %s6, %s4
  $region1: #{tpu_custom_call.1} parent=0
    #allocation4 [shape = 'u8[4096]{0}', space=vmem, size = 0x1000, scoped, tag = 'input window, operand 0']
    #allocation5 [shape = 's32[2]{0}', space=sflag, size = 0x8, scoped, tag = 'scoped memory for tpu_custom_call.1']
    #allocation6 [shape = 's32[2]{0}', space=sflag, size = 0x8, scoped, tag = 'scoped memory for tpu_custom_call.1']
    #allocation7 [shape = 'u8[4096]{0}', space=vmem, size = 0x1000, scoped, tag = 'output window, operand 0']
    %8 = vsyncpa [#allocation5], 0
    %s9 = scalar_lea.sflag [#allocation5], 1
    %10 = vsyncpa %s9, 0
    %11 = vsyncpa [#allocation6], 0
    %s12 = scalar_lea.sflag [#allocation6], 1
    %13 = vsyncpa %s12, 0
    loop: start=0, step=1, limit=4
    $region2: #{tpu_custom_call.1} parent=1 // loop_pre_header
      _
    $region3: #{tpu_custom_call.1} parent=1 // loop_header
      %s15 = sphi 0, %s19
      %p16 = scmp.ge.s32.totalorder %s15, 4
      %s25 = sphi 0, %s27
      %s28 = sphi 0, %s25
      %s29 = sphi 0, %s28
      %s45 = sphi 0, %s29
      %s49 = sphi 0, %s49
      %s51 = sphi 0, %s49
      %s52 = sphi 0, %s51
      %s66 = sphi 0, %s52
      %s70 = sphi 0, %s70
      %s72 = sphi 0, %s70
      %s73 = sphi 0, %s72
      %s87 = sphi 0, %s73
      %s93 = sphi 0, %s95
      %s96 = sphi 0, %s93
      %s97 = sphi 0, %s96
      %s113 = sphi 0, %s97
    $region4: #{tpu_custom_call.1} parent=1 // loop_header_branch
      %18 = sbr.rel (%p16) target = $region8
    $region5: #{tpu_custom_call.1} parent=1 // loop_body
      %s20 = ssub.s32 %s15, 1
      %s21 = ssub.s32 %s15, 2
      %s22 = sadd.s32 %s15, 1
      %s23 = ssub.s32 %s15, %s22
      %p24 = scmp.eq.s32.totalorder %s23, 0
      %s26 = sadd.s32 %s25, 1
      %s27 = scalar_select %p24, %s25, %s26
      %p30 = pneg %p24
      %p31 = scmp.eq.s32.totalorder %s15, 1
      %p32 = por %p30, %p31
      %p33 = scmp.ne.s32.totalorder %s25, %s28
      %p34 = scmp.eq.s32.totalorder %s15, 0
      %p35 = por %p33, %p34
      %p36 = scmp.ne.s32.totalorder %s25, %s28
      %p37 = scmp.eq.s32.totalorder %s20, 1
      %p38 = por %p36, %p37
      %p39 = scmp.ne.s32.totalorder %s28, %s29
      %p40 = scmp.eq.s32.totalorder %s20, 0
      %p41 = por %p39, %p40
      %p42 = scmp.ne.s32.totalorder %s28, %s29
      %p43 = scmp.eq.s32.totalorder %s21, 1
      %p44 = por %p42, %p43
      %p46 = scmp.ne.s32.totalorder %s29, %s45
      %p47 = scmp.eq.s32.totalorder %s21, 0
      %p48 = por %p46, %p47
      %s50 = sadd.s32 %s49, 1
      %p53 = scmp.eq.s32.totalorder %s15, 1
      %p54 = scmp.ne.s32.totalorder %s49, %s51
      %p55 = scmp.eq.s32.totalorder %s15, 0
      %p56 = por %p54, %p55
      %p57 = scmp.ne.s32.totalorder %s49, %s51
      %p58 = scmp.eq.s32.totalorder %s20, 1
      %p59 = por %p57, %p58
      %p60 = scmp.ne.s32.totalorder %s51, %s52
      %p61 = scmp.eq.s32.totalorder %s20, 0
      %p62 = por %p60, %p61
      %p63 = scmp.ne.s32.totalorder %s51, %s52
      %p64 = scmp.eq.s32.totalorder %s21, 1
      %p65 = por %p63, %p64
      %p67 = scmp.ne.s32.totalorder %s52, %s66
      %p68 = scmp.eq.s32.totalorder %s21, 0
      %p69 = por %p67, %p68
      %s71 = sadd.s32 %s70, 1
      %p74 = scmp.eq.s32.totalorder %s15, 1
      %p75 = scmp.ne.s32.totalorder %s70, %s72
      %p76 = scmp.eq.s32.totalorder %s15, 0
      %p77 = por %p75, %p76
      %p78 = scmp.ne.s32.totalorder %s70, %s72
      %p79 = scmp.eq.s32.totalorder %s20, 1
      %p80 = por %p78, %p79
      %p81 = scmp.ne.s32.totalorder %s72, %s73
      %p82 = scmp.eq.s32.totalorder %s20, 0
      %p83 = por %p81, %p82
      %p84 = scmp.ne.s32.totalorder %s72, %s73
      %p85 = scmp.eq.s32.totalorder %s21, 1
      %p86 = por %p84, %p85
      %p88 = scmp.ne.s32.totalorder %s73, %s87
      %p89 = scmp.eq.s32.totalorder %s21, 0
      %p90 = por %p88, %p89
      %s91 = ssub.s32 %s15, %s22
      %p92 = scmp.eq.s32.totalorder %s91, 0
      %s94 = sadd.s32 %s93, 1
      %s95 = scalar_select %p92, %s93, %s94
      %p98 = pneg %p92
      %p99 = scmp.eq.s32.totalorder %s15, 1
      %p100 = por %p98, %p99
      %p101 = scmp.ne.s32.totalorder %s93, %s96
      %p102 = scmp.eq.s32.totalorder %s15, 0
      %p103 = por %p101, %p102
      %p104 = scmp.ne.s32.totalorder %s93, %s96
      %p105 = scmp.eq.s32.totalorder %s20, 1
      %p106 = por %p104, %p105
      %p107 = scmp.ne.s32.totalorder %s96, %s97
      %p108 = scmp.eq.s32.totalorder %s20, 0
      %p109 = por %p107, %p108
      %p110 = scmp.ne.s32.totalorder %s96, %s97
      %p111 = scmp.eq.s32.totalorder %s21, 1
      %p112 = por %p110, %p111
      %p114 = scmp.ne.s32.totalorder %s97, %s113
      %p115 = scmp.eq.s32.totalorder %s21, 0
      %p116 = por %p114, %p115
      %p117 = scmp.le.s32.totalorder 1, %s15
      %p118 = scmp.lt.s32.totalorder %s15, 3
      %p119 = pnand %p117, %p118
      %p120 = pneg %p119
      // Predicated region
      $region9: #{tpu_custom_call.1} parent=5 // pred_check
        _
      $region10: #{tpu_custom_call.1} parent=5 // pred_check_branch
        %122 = sbr.rel (%p119) target = $region12
      $region11: #{tpu_custom_call.1} parent=5 // pred_region
        %s123 = ssub.s32 %s15, 1
        // Predicated region
        $region13: #{tpu_custom_call.1} parent=11 // pred_check
          %p124 = pneg %p62
        $region14: #{tpu_custom_call.1} parent=11 // pred_check_branch
          %126 = sbr.rel (%p124) target = $region16
        $region15: #{tpu_custom_call.1} parent=11 // pred_region
          _
        $region16: #{tpu_custom_call.1} parent=11 // pred_fallthru
          _
        // Predicated region
        $region17: #{tpu_custom_call.1} parent=11 // pred_check
          %p127 = pneg %p83
        $region18: #{tpu_custom_call.1} parent=11 // pred_check_branch
          %129 = sbr.rel (%p127) target = $region20
        $region19: #{tpu_custom_call.1} parent=11 // pred_region
          _
        $region20: #{tpu_custom_call.1} parent=11 // pred_fallthru
          _
      $region12: #{tpu_custom_call.1} parent=5 // pred_fallthru
        _
      %p130 = scmp.lt.s32.totalorder %s15, 2
      // Predicated region
      $region21: #{tpu_custom_call.1} parent=5 // pred_check
        %p131 = pneg %p130
      $region22: #{tpu_custom_call.1} parent=5 // pred_check_branch
        %133 = sbr.rel (%p131) target = $region24
      $region23: #{tpu_custom_call.1} parent=5 // pred_region
        // Predicated region
        $region25: #{tpu_custom_call.1} parent=23 // pred_check
          %p134 = pneg %p35
        $region26: #{tpu_custom_call.1} parent=23 // pred_check_branch
          %136 = sbr.rel (%p134) target = $region28
        $region27: #{tpu_custom_call.1} parent=23 // pred_region
          %s137 = sand.u32 %s25, 1
          %s138 = scalar_lea.sflag [#allocation5], %s137
          %s139 = sand.u32 %s25, 1
          %s140 = smul.addr %s139, 4
          %s141 = scalar_lea.vmem [#allocation4], %s140
          %s143 = ssub.s32 64, 64
          %144 = vsyncadd %s138, %s143
          %s145 = smul.addr %s15, 64
          %s146 = scalar_lea.hbm %s0, %s145
          %s148 = sshll.u32 %s141, 4
          %s149 = int_to_ptr.vmem [resolvable:$true] %s148
          %151 = dma.hbm_to_vmem [thread:$0]  %s146, 64, %s149, %s138
        $region28: #{tpu_custom_call.1} parent=23 // pred_fallthru
          _
      $region24: #{tpu_custom_call.1} parent=5 // pred_fallthru
        _
      %p152 = scmp.le.s32.totalorder 1, %s15
      %p153 = scmp.lt.s32.totalorder %s15, 3
      %p154 = pnand %p152, %p153
      %p155 = pneg %p154
      // Predicated region
      $region29: #{tpu_custom_call.1} parent=5 // pred_check
        _
      $region30: #{tpu_custom_call.1} parent=5 // pred_check_branch
        %157 = sbr.rel (%p154) target = $region32
      $region31: #{tpu_custom_call.1} parent=5 // pred_region
        %s158 = ssub.s32 %s15, 1
        %s159 = sand.u32 %s28, 1
        %s160 = scalar_lea.sflag [#allocation5], %s159
        %s161 = sand.u32 %s28, 1
        %s162 = smul.addr %s161, 4
        %s163 = scalar_lea.vmem [#allocation4], %s162
        // Predicated region
        $region33: #{tpu_custom_call.1} parent=31 // pred_check
          %p164 = pneg %p41
        $region34: #{tpu_custom_call.1} parent=31 // pred_check_branch
          %166 = sbr.rel (%p164) target = $region36
        $region35: #{tpu_custom_call.1} parent=31 // pred_region
          %167 = dma.done %s160, 64
        $region36: #{tpu_custom_call.1} parent=31 // pred_fallthru
          _
        %s168 = sand.u32 %s28, 1
        %s169 = scalar_lea.sflag [#allocation5], %s168
        %s170 = sand.u32 %s28, 1
        %s171 = smul.addr %s170, 4
        %s172 = scalar_lea.vmem [#allocation4], %s171
        %p173 = pneg %p41
        %p174 = pneg %p38
        %p175 = pneg %p62
        %p176 = pneg %p59
        %p177 = pneg %p83
        %p178 = pneg %p80
        %p179 = pneg %p109
        %p180 = pneg %p106
        %s181 = sand.u32 %s96, 1
        %s182 = scalar_lea.sflag [#allocation6], %s181
        %s183 = sand.u32 %s96, 1
        %s184 = smul.addr %s183, 4
        %s185 = scalar_lea.vmem [#allocation7], %s184
        %v186 = vld [vmem:[%s163] sm:$0xf]
        %vm187 = vcmask 158720
        %188 = vst.msk [vmem:[#allocation2] sm:$0xf] %vm187, 0.0
        %v189 = vmax.f32 %v186, 0.0
        %191 = vrot.lane.b32.xlu0 %v189, 2
        %v192 = vpop.permute.xlu0 %191
        %vm194 = vcmask 142352
        %195 = vst.msk [vmem:[#allocation2] sm:$0xf] %vm194, %v192
        %v196 = vld [vmem:[#allocation2] sm:$0xf]
        %vm197 = vcmask 125952
        %198 = vst.msk [vmem:[#allocation3] sm:$0xf] %vm197, %v196
        %v199 = vld [vmem:[#allocation2] sm:$0xf]
        %201 = vrot.lane.b32.xlu0 %v199, 127
        %v202 = vpop.permute.xlu0 %201
        %204 = vst.msk [vmem:[#allocation3 + $0x4] sm:$0xf] %vm197, %v202
        %v205 = vld [vmem:[#allocation2] sm:$0xf]
        %207 = vrot.lane.b32.xlu0 %v205, 126
        %v208 = vpop.permute.xlu0 %207
        %210 = vst.msk [vmem:[#allocation3 + $0x8] sm:$0xf] %vm197, %v208
        %v211 = vld [vmem:[#allocation2] sm:$0xf]
        %213 = vrot.lane.b32.xlu0 %v211, 125
        %v214 = vpop.permute.xlu0 %213
        %216 = vst.msk [vmem:[#allocation3 + $0xc] sm:$0xf] %vm197, %v214
        %v217 = vld [vmem:[#allocation2] sm:$0xf]
        %219 = vrot.lane.b32.xlu0 %v217, 124
        %v220 = vpop.permute.xlu0 %219
        %222 = vst.msk [vmem:[#allocation3 + $0x10] sm:$0xf] %vm197, %v220
        %v223 = vld [vmem:[%s1] sm:$0xf]
        %v224 = vld [vmem:[#allocation3] sm:$0xff]
        %v225 = vld [vmem:[#allocation3 + $0x8] sm:$0xff]
        %v226 = vld [vmem:[#allocation3 + $0x10] sm:$0xf]
        %v227 = vld [vmem:[%s2] sm:$0xf]
        %229 = vset.pattern.permute.xlu0 0
        %230 = vperm.xlu0 %229, %v227
        %v231 = vpop.permute.xlu0 %230
        %vm233 = vcmask 162816
        %v235 = vsel %vm233, %v223, 0
        %vm237 = vcmask 1043456
        %v239 = vsel %vm237, %v226, 0
        %241 = vmatprep.subr.mxu0 0.0
        %242 = vmatpush1.msra.mxu0 %v224
        %243 = vmatprep.subr.mxu0 0.0
        %244 = vmatpush1.msra.mxu0 %v225
        %245 = vmatprep.subr.mxu0 0.0
        %246 = vmatpush1.msra.mxu0 %v239
        %247 = vmatprep.subr.mxu0 0.0
        %248 = vmatpush1.msra.mxu0 0.0
        %249 = vmatprep.subr.mxu0 0.0
        %250 = vmatpush1.msra.mxu0 0.0
        %251 = vmatprep.subr.mxu0 0.0
        %252 = vmatpush1.msra.mxu0 0.0
        %253 = vmatprep.subr.mxu0 0.0
        %254 = vmatpush1.msra.mxu0 0.0
        %255 = vmatprep.subr.mxu0 0.0
        %256 = vmatpush1.msra.mxu0 0.0
        %257 = vmatprep.subr.mxu0 0.0
        %258 = vmatpush1.msra.mxu0 0.0
        %259 = vmatprep.subr.mxu0 0.0
        %260 = vmatpush1.msra.mxu0 0.0
        %261 = vmatprep.subr.mxu0 0.0
        %262 = vmatpush1.msra.mxu0 0.0
        %263 = vmatprep.subr.mxu0 0.0
        %264 = vmatpush1.msra.mxu0 0.0
        %265 = vmatprep.subr.mxu0 0.0
        %266 = vmatpush1.msra.mxu0 0.0
        %267 = vmatprep.subr.mxu0 0.0
        %268 = vmatpush1.msra.mxu0 0.0
        %269 = vmatprep.subr.mxu0 0.0
        %270 = vmatpush1.msra.mxu0 0.0
        %271 = vmatprep.subr.mxu0 0.0
        %272 = vmatpush1.msra.mxu0 0.0
        %273 = vmatprep.subr.mxu0 0.0
        %274 = vmatpush1.msra.mxu0 0.0
        %275 = vmatprep.subr.mxu0 0.0
        %276 = vmatpush1.msra.mxu0 0.0
        %277 = vmatprep.subr.mxu0 0.0
        %278 = vmatpush1.msra.mxu0 0.0
        %279 = vmatprep.subr.mxu0 0.0
        %280 = vmatpush1.msra.mxu0 0.0
        %281 = vmatprep.subr.mxu0 0.0
        %282 = vmatpush1.msra.mxu0 0.0
        %283 = vmatprep.subr.mxu0 0.0
        %284 = vmatpush1.msra.mxu0 0.0
        %285 = vmatprep.subr.mxu0 0.0
        %286 = vmatpush1.msra.mxu0 0.0
        %287 = vmatprep.subr.mxu0 0.0
        %288 = vmatpush1.msra.mxu0 0.0
        %289 = vmatprep.subr.mxu0 0.0
        %290 = vmatpush1.msra.mxu0 0.0
        %291 = vmatprep.subr.mxu0 0.0
        %292 = vmatpush1.msra.mxu0 0.0
        %293 = vmatprep.subr.mxu0 0.0
        %294 = vmatpush1.msra.mxu0 0.0
        %295 = vmatprep.subr.mxu0 0.0
        %296 = vmatpush1.msra.mxu0 0.0
        %297 = vmatprep.subr.mxu0 0.0
        %298 = vmatpush1.msra.mxu0 0.0
        %299 = vmatprep.subr.mxu0 0.0
        %300 = vmatpush1.msra.mxu0 0.0
        %301 = vmatprep.subr.mxu0 0.0
        %302 = vmatpush1.msra.mxu0 0.0
        %303 = vmatprep.subr.mxu0 0.0
        %304 = vmatpush1.msra.mxu0 0.0
        %305 = vmatprep.mubr.f32.mxu0 0.0
        %306 = vmatmul.mubr.f32.gmra.mrb[0].mxu0 %v235
        %v307 = vpop.f32.mrb[0].mxu0
        %v308 = vadd.f32 %v231, %v307
        %v309 = vpop.f32.mrb[0].mxu0
        %310 = vdwg.mxu0
        %v311 = vmul.f32 %v308, 0.3
        %v312 = vadd.f32 %v186, %v311
        %313 = vst.msk [vmem:[%s185] sm:$0xf] %vm197, %v312
        %s314 = sand.u32 %s96, 1
        %s315 = scalar_lea.sflag [#allocation6], %s314
        %s316 = sand.u32 %s96, 1
        %s317 = smul.addr %s316, 4
        %s318 = scalar_lea.vmem [#allocation7], %s317
        // Predicated region
        $region37: #{tpu_custom_call.1} parent=31 // pred_check
          %p319 = pneg %p106
        $region38: #{tpu_custom_call.1} parent=31 // pred_check_branch
          %321 = sbr.rel (%p319) target = $region40
        $region39: #{tpu_custom_call.1} parent=31 // pred_region
          %s323 = ssub.s32 64, 64
          %324 = vsyncadd %s315, %s323
          %s325 = smul.addr %s20, 64
          %s326 = scalar_lea.hbm %s3, %s325
          %s328 = sshll.u32 %s318, 4
          %s329 = int_to_ptr.vmem [resolvable:$true] %s328
          %331 = dma.vmem_to_hbm [thread:$0]  %s329, 64, %s326, %s315
        $region40: #{tpu_custom_call.1} parent=31 // pred_fallthru
          _
      $region32: #{tpu_custom_call.1} parent=5 // pred_fallthru
        _
      %p332 = scmp.le.s32.totalorder 2, %s15
      // Predicated region
      $region41: #{tpu_custom_call.1} parent=5 // pred_check
        %p333 = pneg %p332
      $region42: #{tpu_custom_call.1} parent=5 // pred_check_branch
        %335 = sbr.rel (%p333) target = $region44
      $region43: #{tpu_custom_call.1} parent=5 // pred_region
        %s336 = ssub.s32 %s15, 2
        // Predicated region
        $region45: #{tpu_custom_call.1} parent=43 // pred_check
          %p337 = pneg %p112
        $region46: #{tpu_custom_call.1} parent=43 // pred_check_branch
          %339 = sbr.rel (%p337) target = $region48
        $region47: #{tpu_custom_call.1} parent=43 // pred_region
          %s340 = sand.u32 %s97, 1
          %s341 = scalar_lea.sflag [#allocation6], %s340
          %s342 = sand.u32 %s97, 1
          %s343 = smul.addr %s342, 4
          %s344 = scalar_lea.vmem [#allocation7], %s343
          %345 = dma.done %s341, 64
        $region48: #{tpu_custom_call.1} parent=43 // pred_fallthru
          _
      $region44: #{tpu_custom_call.1} parent=5 // pred_fallthru
        _
    $region6: #{tpu_custom_call.1} parent=1 // loop_footer
      %s19 = sadd.s32 1, %s15
    $region7: #{tpu_custom_call.1} parent=1 // loop_footer_branch
      %14 = sbr.rel target = $region3
    $region8: #{tpu_custom_call.1} parent=1 // loop_exit
      _
    %346 = vsyncpa [#allocation5], 1
    %s347 = scalar_lea.sflag [#allocation5], 1
    %348 = vsyncpa %s347, 1
    %349 = vsyncpa [#allocation6], 1
    %s350 = scalar_lea.sflag [#allocation6], 1
    %351 = vsyncpa %s350, 1

</llo_original>
